<compile_context>
chip_gen: v7x
topology: tpu7x:2x2x1
jax: 0.10.0
libtpu: 0.0.40
codegen_flags: <defaults>
</compile_context>

<pallas_src>
import jax
import jax.numpy as jnp
from jax.experimental import pallas as pl
from jax.experimental.pallas import tpu as pltpu


def _accum_kernel(h_ref, out_ref):
    """Grid: (cores, nf_tiles, subject_blocks).

    h_ref   : VMEM (s_blk, t_nf)      lane-dense slab of flattened H
    out_ref : VMEM (1, 1, t_nf) f32   per-(core, nf-tile) sum over subjects;
                                      resident across the trailing axis.
    """
    s = pl.program_id(2)

    @pl.when(s == 0)
    def _():
        out_ref[...] = jnp.zeros_like(out_ref)

    h = h_ref[...].astype(jnp.float32)                       # (s_blk, t_nf)
    out_ref[...] += jnp.sum(h, axis=0, keepdims=True)[None]  # (1, 1, t_nf)


def _round_up(x, m):
    return -(-x // m) * m


def _vmem_budget_and_limit():
    """Generation-aware VMEM budget (bytes) and matching vmem_limit_bytes."""
    phys = 64 * 1024 * 1024
    try:
        phys = int(pltpu.get_tpu_info().vmem_capacity_bytes)
    except Exception:
        pass
    if phys <= 64 * 1024 * 1024:          # v7x-class: 64 MiB per TensorCore
        return 40 * 1024 * 1024, 56 * 1024 * 1024
    return 88 * 1024 * 1024, 112 * 1024 * 1024   # v5e / v6e: 128 MiB


def _two_tensorcores():
    """Heuristic: chips with 2 TensorCores per chip (megacore)."""
    try:
        kind = jax.devices()[0].device_kind.lower()
    except Exception:
        return False
    return any(t in kind for t in ("v4", "v5p", "v7", "tpu7"))


def _choose_tiles(S, NF, itemsize, budget_bytes, allow_core_split):
    LANE, SUB = 128, 8

    def s_capacity(t_nf):
        t_nf_p = _round_up(t_nf, LANE)
        out_bytes = 2 * SUB * t_nf_p * 4          # resident out block, 2 bufs
        per_row = t_nf_p * itemsize
        return max(0, (budget_bytes - out_bytes) // (2 * per_row))

    # Lane tile over the flattened node*feature axis: full NF when it fits,
    # otherwise the largest multiple-of-128 divisor that leaves room for a
    # healthy (>= 8 row) subject block.
    t_nf = NF
    if s_capacity(NF) < min(S, SUB) and NF % LANE == 0:
        for cand in range(NF - LANE, 0, -LANE):
            if NF % cand == 0 and s_capacity(cand) >= min(S, SUB):
                t_nf = cand
                break
    # TODO(synk): if NF is huge with no multiple-of-128 divisor that fits the
    # budget, we fall back to full-NF tiles with a minimal subject block.

    cap = s_capacity(t_nf)
    if cap >= S:
        s_blk = S                                  # single full-S block
    else:
        s_blk = max(SUB, (min(cap, S) // SUB) * SUB)

    nf_tiles = NF // t_nf
    nb_full = S // s_blk                           # full, in-bounds blocks
    n_cores = 2 if (allow_core_split and nf_tiles == 1 and nb_full >= 2) else 1
    s_steps = nb_full // n_cores                   # per-core full blocks
    return t_nf, nf_tiles, s_blk, s_steps, n_cores


def topk_pool(H, w, k):
    """H: (S, N, F) float32/bfloat16, w: (1,) float32 scalar param, k: int."""
    S, N, F = H.shape
    NF = N * F
    itemsize = jnp.dtype(H.dtype).itemsize

    budget, vmem_limit = _vmem_budget_and_limit()
    t_nf, nf_tiles, s_blk, s_steps, n_cores = _choose_tiles(
        S, NF, itemsize, budget, allow_core_split=_two_tensorcores())

    Hf = H.reshape(S, NF)                          # contiguous, free reshape
    n_kernel = n_cores * s_steps * s_blk           # subjects covered in-kernel

    partial = pl.pallas_call(
        _accum_kernel,
        out_shape=jax.ShapeDtypeStruct((n_cores, 1, NF), jnp.float32),
        grid=(n_cores, nf_tiles, s_steps),
        in_specs=[pl.BlockSpec((s_blk, t_nf),
                               lambda c, j, s: (c * s_steps + s, j))],
        out_specs=pl.BlockSpec((1, 1, t_nf), lambda c, j, s: (c, 0, j)),
        compiler_params=pltpu.CompilerParams(
            dimension_semantics=("parallel", "parallel", "arbitrary"),
            vmem_limit_bytes=vmem_limit,
        ),
        cost_estimate=pl.CostEstimate(
            flops=n_kernel * NF,
            transcendentals=0,
            bytes_accessed=n_kernel * NF * itemsize + n_cores * NF * 4,
        ),
    )(Hf)

    node_feat_sum = jnp.sum(partial, axis=(0, 1))  # (NF,) f32
    if n_kernel < S:                               # ragged subject tail (< s_blk
        node_feat_sum = node_feat_sum + jnp.sum(   # rows): tiny plain-JAX reduce
            Hf[n_kernel:].astype(jnp.float32), axis=0)

    # Hoisted scale: w / ||w||_2 (exactly sign(w) for a scalar).  Guard w == 0
    # to avoid the 0/0 NaN path (documented divergence from PyTorch there).
    w = w.astype(jnp.float32).reshape(())
    norm = jnp.sqrt(w * w)
    scale = jnp.where(norm > 0, w / norm, jnp.zeros_like(w))

    score = node_feat_sum.reshape(N, F).sum(axis=-1) * scale   # (N,)
    _, index = jax.lax.top_k(score, k)             # top-k node indices
    # PyTorch: index[argsort(index)] == the top-k indices sorted ascending.
    # (Tie-breaking may differ from torch.topk when scores are exactly equal.)
    return jnp.sort(index)


def _topk_pool_ref(H, w, k):
    """Plain-JAX reference of the PyTorch forward."""
    w = w.astype(jnp.float32).reshape(())
    score = jnp.sum(jnp.sum(H * w, axis=-1), axis=0) / jnp.sqrt(w * w)
    _, index = jax.lax.top_k(score, k)
    return jnp.sort(index)


if __name__ == "__main__":
    key = jax.random.PRNGKey(0)
    S, N, F, k = 4, 16, 32, 5               # subjects, nodes, features, k

    H = jax.random.normal(key, (S, N, F), dtype=jnp.float32)
    # nn.Parameter(torch.tensor(num_feature).float()) -> scalar = num_feature
    w = jnp.array([float(F)], dtype=jnp.float32)

    out = topk_pool(H, w, k)
    jax.block_until_ready(out)

    ref = _topk_pool_ref(H, w, k)
    assert jnp.array_equal(out, ref), (out, ref)

    print("KERNEL_OK")
</pallas_src>

<mosaic_0001>
module attributes {stable_mosaic.version = 11 : i64} {
  func.func @_accum_kernel(%arg0: i32, %arg1: i32, %arg2: i32, %arg3: memref<4x512xf32, #tpu.memory_space<vmem>>, %arg4: memref<1x1x512xf32, #tpu.memory_space<vmem>>) attributes {dimension_semantics = [#tpu.dimension_semantics<parallel>, #tpu.dimension_semantics<parallel>, #tpu.dimension_semantics<arbitrary>], iteration_bounds = array<i64: 1, 1, 1>, scalar_prefetch = 0 : i64, scratch_operands = 0 : i64, tpu.core_type = #tpu.core_type<tc>, window_params = [{transform_indices = @transform_0, window_bounds = array<i64: 4, 512>}, {transform_indices = @transform_1, window_bounds = array<i64: 1, 1, 512>}]} {
    %c0_i32 = arith.constant 0 : i32
    %0 = arith.cmpi eq, %arg2, %c0_i32 : i32
    %1 = arith.extui %0 : i1 to i32
    %c0_i32_0 = arith.constant 0 : i32
    %2 = arith.cmpi ne, %1, %c0_i32_0 : i32
    scf.if %2 {
      %cst_8 = arith.constant 0.000000e+00 : f32
      %10 = vector.broadcast %cst_8 : f32 to vector<1x1x512xf32>
      %c0_9 = arith.constant 0 : index
      %c0_10 = arith.constant 0 : index
      %c0_11 = arith.constant 0 : index
      %11 = vector.load %arg4[%c0_9, %c0_10, %c0_11] : memref<1x1x512xf32, #tpu.memory_space<vmem>>, vector<1x1x512xf32>
      tpu.vector_store %arg4[%c0_9, %c0_10, %c0_11], %10 {strides = array<i32>} : memref<1x1x512xf32, #tpu.memory_space<vmem>>, vector<1x1x512xf32>,
    } else {
    }
    %c0 = arith.constant 0 : index
    %c0_1 = arith.constant 0 : index
    %3 = vector.load %arg3[%c0, %c0_1] : memref<4x512xf32, #tpu.memory_space<vmem>>, vector<4x512xf32>
    %c0_2 = arith.constant 0 : index
    %c0_3 = arith.constant 0 : index
    %c0_4 = arith.constant 0 : index
    %4 = vector.load %arg4[%c0_2, %c0_3, %c0_4] : memref<1x1x512xf32, #tpu.memory_space<vmem>>, vector<1x1x512xf32>
    %cst = arith.constant dense<0.000000e+00> : vector<512xf32>
    %5 = vector.multi_reduction <add>, %3, %cst [0] : vector<4x512xf32> to vector<512xf32>
    %6 = vector.shape_cast %5 : vector<512xf32> to vector<1x512xf32>
    %7 = vector.shape_cast %6 : vector<1x512xf32> to vector<1x1x512xf32>
    %8 = arith.addf %4, %7 : vector<1x1x512xf32>
    %c0_5 = arith.constant 0 : index
    %c0_6 = arith.constant 0 : index
    %c0_7 = arith.constant 0 : index
    %9 = vector.load %arg4[%c0_5, %c0_6, %c0_7] : memref<1x1x512xf32, #tpu.memory_space<vmem>>, vector<1x1x512xf32>
    tpu.vector_store %arg4[%c0_5, %c0_6, %c0_7], %8 {strides = array<i32>} : memref<1x1x512xf32, #tpu.memory_space<vmem>>, vector<1x1x512xf32>,
    return
  }
  func.func @transform_0(%arg0: i32, %arg1: i32, %arg2: i32) -> (i32, i32) {
    %c1_i32 = arith.constant 1 : i32
    %0 = arith.muli %arg0, %c1_i32 : i32
    %1 = arith.addi %0, %arg2 : i32
    %c0_i32 = arith.constant 0 : i32
    return %1, %arg1 : i32, i32
  }
  func.func @transform_1(%arg0: i32, %arg1: i32, %arg2: i32) -> (i32, i32, i32) {
    %c0_i32 = arith.constant 0 : i32
    %c0_i32_0 = arith.constant 0 : i32
    return %arg0, %c0_i32, %arg1 : i32, i32, i32
  }
}

</mosaic_0001>

<llo_original>
// kernel: tpu_custom_call.1
$region0: #{tpu_custom_call.1}
  #allocation0 [shape = 'u32[]', space=smem, size = 0x4, offset = 0x4, fixed_abs, tag = 'smem constant byte address 0x4 - core index']
  #allocation1 [shape = 'u32[144,128]{1,0:T(1,128)}', space=vmem, size = 0x12000, scoped, tag = 'internal scratch']
  %s0 = inlined_call_operand.hbm [shape: f32[4,512], index: 0, kind: input, shape index: {}]
  %s1 = inlined_call_operand.hbm [shape: f32[1,1,512], index: 1, kind: output, shape index: {}]
  %s2 = sld [smem:[#allocation0]]
  $region22: #{tpu_custom_call.1} parent=0
    _
  %s4 = ssub.s32 1, %s2
  %s5 = scalar_select 0, %s4, %s2
  $region1: #{tpu_custom_call.1} parent=0
    #allocation2 [shape = 'u8[8192]{0}', space=vmem, size = 0x2000, scoped, tag = 'input window, operand 0, single buffered']
    #allocation3 [shape = 's32[1]{0}', space=sflag, size = 0x4, scoped, tag = 'scoped memory for tpu_custom_call.1']
    #allocation4 [shape = 's32[1]{0}', space=sflag, size = 0x4, scoped, tag = 'scoped memory for tpu_custom_call.1']
    #allocation5 [shape = 'u8[2048]{0}', space=vmem, size = 0x800, scoped, tag = 'output window, operand 0, single buffered']
    %6 = vsyncpa [#allocation3], 0
    %7 = vsyncpa [#allocation4], 0
    // Predicated region
    $region2: #{tpu_custom_call.1} parent=1 // pred_check
      _
    $region3: #{tpu_custom_call.1} parent=1 // pred_check_branch
      %9 = sbr.rel (0) target = $region5
    $region4: #{tpu_custom_call.1} parent=1 // pred_region
      %s10 = sadd.s32 0, 0
      %s12 = ssub.s32 256, 256
      %13 = vsyncadd [#allocation3], %s12
      %s14 = smul.addr %s10, 4
      %s15 = smul.addr %s14, 64
      %s16 = scalar_lea.hbm %s0, %s15
      %s18 = sshll.u32 [#allocation2], 4
      %s19 = int_to_ptr.vmem [resolvable:$true] %s18
      %21 = dma.hbm_to_vmem [thread:$0]  %s16, 256, %s19, [#allocation3]
    $region5: #{tpu_custom_call.1} parent=1 // pred_fallthru
      _
    // Predicated region
    $region6: #{tpu_custom_call.1} parent=1 // pred_check
      _
    $region7: #{tpu_custom_call.1} parent=1 // pred_check_branch
      %23 = sbr.rel (0) target = $region9
    $region8: #{tpu_custom_call.1} parent=1 // pred_region
      %24 = dma.done [#allocation3], 256
    $region9: #{tpu_custom_call.1} parent=1 // pred_fallthru
      _
    %s25 = sadd.s32 0, 0
    %p26 = scmp.eq.s32.totalorder 0, 0
    // Predicated region
    $region10: #{tpu_custom_call.1} parent=1 // pred_check
      %p27 = pneg %p26
    $region11: #{tpu_custom_call.1} parent=1 // pred_check_branch
      %29 = sbr.rel (%p27) target = $region13
    $region12: #{tpu_custom_call.1} parent=1 // pred_region
      %v30 = vlaneseq
      %vm31 = vcmp.ge.s32.totalorder %v30, 0
      %vm32 = vcmp.lt.s32.totalorder %v30, 512
      %vm33 = vmand %vm31, %vm32
      %34 = vst.msk [vmem:[#allocation5] sm:$0xf] %vm33, 0.0
    $region13: #{tpu_custom_call.1} parent=1 // pred_fallthru
      _
    %v35 = vld [vmem:[#allocation2] sm:$0xff]
    %v36 = vld [vmem:[#allocation2 + $0x8] sm:$0xff]
    %v37 = vld [vmem:[#allocation5] sm:$0xf]
    %v40 = vcombine.high %v35, %v35
    %v41 = vcombine.high %v36, %v36
    %vm44 = vcmask 1043456
    %v45 = vsel %vm44, %v35, 0.0
    %v46 = vrot.slane %v45, 4
    %v47 = vadd.f32 %v45, %v46
    %v48 = vrot.slane %v47, 2
    %v49 = vadd.f32 %v47, %v48
    %v50 = vrot.slane %v49, 1
    %v51 = vadd.f32 %v49, %v50
    %v52 = vsel %vm44, %v40, 0.0
    %v53 = vrot.slane %v52, 4
    %v54 = vadd.f32 %v52, %v53
    %v55 = vrot.slane %v54, 2
    %v56 = vadd.f32 %v54, %v55
    %v57 = vrot.slane %v56, 1
    %v58 = vadd.f32 %v56, %v57
    %v59 = vsel %vm44, %v36, 0.0
    %v60 = vrot.slane %v59, 4
    %v61 = vadd.f32 %v59, %v60
    %v62 = vrot.slane %v61, 2
    %v63 = vadd.f32 %v61, %v62
    %v64 = vrot.slane %v63, 1
    %v65 = vadd.f32 %v63, %v64
    %v66 = vsel %vm44, %v41, 0.0
    %v67 = vrot.slane %v66, 4
    %v68 = vadd.f32 %v66, %v67
    %v69 = vrot.slane %v68, 2
    %v70 = vadd.f32 %v68, %v69
    %v71 = vrot.slane %v70, 1
    %v72 = vadd.f32 %v70, %v71
    %v77 = vcombine.low %v51, %v58
    %v78 = vcombine.low %v65, %v72
    %v80 = vunpack.c.l.s4 1966171168
    %v81 = vunpack.c.0.s8 %v80
    %v82 = vlaneseq
    %v83 = vshrl.u32 %v82, 7
    %v84 = vsub.s32 %v81, %v83
    %v85 = vrot.slane %v77, %v84
    %v87 = vunpack.c.l.s4 1966171168
    %v88 = vunpack.c.0.s8 %v87
    %v89 = vlaneseq
    %v90 = vshrl.u32 %v89, 7
    %v91 = vsub.s32 %v88, %v90
    %v92 = vrot.slane %v78, %v91
    %v93 = vcombine.low %v85, %v92
    %v95 = vunpack.c.l.s4 1966171168
    %v96 = vunpack.c.0.s8 %v95
    %v97 = vlaneseq
    %v98 = vshrl.u32 %v97, 7
    %v99 = vsub.s32 %v96, %v98
    %v100 = vrot.slane %v93, %v99
    %v102 = vadd.f32 %v37, %v100
    %v103 = vlaneseq
    %vm104 = vcmp.ge.s32.totalorder %v103, 0
    %vm105 = vcmp.lt.s32.totalorder %v103, 512
    %vm106 = vmand %vm104, %vm105
    %107 = vst.msk [vmem:[#allocation5] sm:$0xf] %vm106, %v102
    // Predicated region
    $region14: #{tpu_custom_call.1} parent=1 // pred_check
      _
    $region15: #{tpu_custom_call.1} parent=1 // pred_check_branch
      %109 = sbr.rel (0) target = $region17
    $region16: #{tpu_custom_call.1} parent=1 // pred_region
      %s111 = ssub.s32 64, 64
      %112 = vsyncadd [#allocation4], %s111
      %s114 = sshll.u32 [#allocation5], 4
      %s115 = int_to_ptr.vmem [resolvable:$true] %s114
      %117 = dma.vmem_to_hbm [thread:$0]  %s115, 64, %s1, [#allocation4]
    $region17: #{tpu_custom_call.1} parent=1 // pred_fallthru
      _
    // Predicated region
    $region18: #{tpu_custom_call.1} parent=1 // pred_check
      _
    $region19: #{tpu_custom_call.1} parent=1 // pred_check_branch
      %119 = sbr.rel (0) target = $region21
    $region20: #{tpu_custom_call.1} parent=1 // pred_region
      %120 = dma.done [#allocation4], 64
    $region21: #{tpu_custom_call.1} parent=1 // pred_fallthru
      _
    %121 = vsyncpa [#allocation3], 1
    %122 = vsyncpa [#allocation4], 1

</llo_original>
